<compile_context>
chip_gen: v7x
topology: tpu7x:2x2x1
jax: 0.10.0
libtpu: 0.0.40
codegen_flags: <defaults>
</compile_context>

<pallas_src>
import functools
import math

import jax
import jax.numpy as jnp
from jax.experimental import pallas as pl
from jax.experimental.pallas import tpu as pltpu


def _round_up(x, m):
    return (x + m - 1) // m * m


# ---------------------------------------------------------------------------
# Projection kernel: feat = x @ W, scores = feat @ attn_mat, res = x @ res_w
# ---------------------------------------------------------------------------
def _make_proj_kernel(with_res):
    if with_res:
        def kernel(x_ref, w_ref, am_ref, rw_ref, feat_ref, sc_ref, res_ref):
            x16 = x_ref[...].astype(jnp.bfloat16)
            feat = jnp.dot(x16, w_ref[...], preferred_element_type=jnp.float32)
            feat_ref[...] = feat.astype(jnp.bfloat16)
            sc_ref[...] = jnp.dot(feat, am_ref[...],
                                  preferred_element_type=jnp.float32)
            res_ref[...] = jnp.dot(x16, rw_ref[...],
                                   preferred_element_type=jnp.float32)
    else:
        def kernel(x_ref, w_ref, am_ref, feat_ref, sc_ref):
            x16 = x_ref[...].astype(jnp.bfloat16)
            feat = jnp.dot(x16, w_ref[...], preferred_element_type=jnp.float32)
            feat_ref[...] = feat.astype(jnp.bfloat16)
            sc_ref[...] = jnp.dot(feat, am_ref[...],
                                  preferred_element_type=jnp.float32)
    return kernel


@functools.lru_cache(maxsize=None)
def _build_proj_call(n_pad, fin, hd, n_scores, tile_r, with_res):
    kernel = _make_proj_kernel(with_res)
    in_specs = [
        pl.BlockSpec((tile_r, fin), lambda i: (i, 0)),     # x rows
        pl.BlockSpec((fin, hd), lambda i: (0, 0)),         # W (bf16)
        pl.BlockSpec((hd, n_scores), lambda i: (0, 0)),    # block-diag attn
    ]
    out_specs = [
        pl.BlockSpec((tile_r, hd), lambda i: (i, 0)),          # feat (bf16)
        pl.BlockSpec((tile_r, n_scores), lambda i: (i, 0)),    # [el | er]
    ]
    out_shape = [
        jax.ShapeDtypeStruct((n_pad, hd), jnp.bfloat16),
        jax.ShapeDtypeStruct((n_pad, n_scores), jnp.float32),
    ]
    if with_res:
        in_specs.append(pl.BlockSpec((fin, hd), lambda i: (0, 0)))     # res_w
        out_specs.append(pl.BlockSpec((tile_r, hd), lambda i: (i, 0)))
        out_shape.append(jax.ShapeDtypeStruct((n_pad, hd), jnp.float32))
    return pl.pallas_call(
        kernel,
        out_shape=tuple(out_shape),
        grid_spec=pltpu.PrefetchScalarGridSpec(
            num_scalar_prefetch=0,
            grid=(n_pad // tile_r,),
            in_specs=in_specs,
            out_specs=tuple(out_specs)),
        compiler_params=pltpu.CompilerParams(
            dimension_semantics=("parallel",),
            vmem_limit_bytes=32 * 1024 * 1024),
    )


# ---------------------------------------------------------------------------
# Attention / aggregation kernel: online edge-softmax + neighborhood matmul
# ---------------------------------------------------------------------------
def _make_attn_kernel(num_heads, out_feats, negative_slope, with_res, with_act):
    H, D = num_heads, out_feats

    def kernel(adj_ref, er_ref, elt_ref, feat_ref, bias_ref, *rest):
        if with_res:
            res_ref, out_ref, m_scr, l_scr, acc_scr = rest
        else:
            res_ref = None
            out_ref, m_scr, l_scr, acc_scr = rest

        k = pl.program_id(1)

        @pl.when(k == 0)
        def _init():
            m_scr[...] = jnp.full_like(m_scr, -1e30)
            l_scr[...] = jnp.zeros_like(l_scr)
            acc_scr[...] = jnp.zeros_like(acc_scr)

        adj = adj_ref[...].astype(jnp.float32)          # (td, ts) 0/1 mask
        neg = (adj - 1.0) * 1e9                         # 0 valid, -1e9 masked
        er = er_ref[...]                                # (td, H)  f32
        elt = elt_ref[...]                              # (H, ts)  f32

        for h in range(H):                              # static head unroll
            s = er[:, h:h + 1] + elt[h:h + 1, :]        # (td, ts)
            s = jnp.where(s > 0, s, negative_slope * s)  # LeakyReLU
            s = s + neg                                  # mask logits for max
            m_prev = m_scr[:, h:h + 1]
            m_new = jnp.maximum(m_prev, jnp.max(s, axis=-1, keepdims=True))
            p = jnp.exp(s - m_new) * adj                 # masked unnorm probs
            corr = jnp.exp(m_prev - m_new)
            l_scr[:, h:h + 1] = corr * l_scr[:, h:h + 1] + jnp.sum(
                p, axis=-1, keepdims=True)
            fh = feat_ref[:, h * D:(h + 1) * D]          # (ts, D) bf16
            acc_scr[:, h * D:(h + 1) * D] = (
                corr * acc_scr[:, h * D:(h + 1) * D]
                + jnp.dot(p.astype(jnp.bfloat16), fh,
                          preferred_element_type=jnp.float32))
            m_scr[:, h:h + 1] = m_new

        @pl.when(k == pl.num_programs(1) - 1)
        def _finalize():
            inv = pl.reciprocal(jnp.maximum(l_scr[...], 1e-20), approx=True)
            for h in range(H):
                acc_scr[:, h * D:(h + 1) * D] = (
                    acc_scr[:, h * D:(h + 1) * D] * inv[:, h:h + 1])
            out = acc_scr[...] + bias_ref[...]
            if with_res:
                out = out + res_ref[...]
            if with_act:
                out = jnp.where(out > 0, out, jnp.expm1(jnp.minimum(out, 0.0)))
            out_ref[...] = out

    return kernel


@functools.lru_cache(maxsize=None)
def _build_attn_call(n_pad, num_heads, out_feats, tile_d, tile_s,
                     negative_slope, with_res, with_act):
    H, D = num_heads, out_feats
    HD = H * D
    kernel = _make_attn_kernel(H, D, negative_slope, with_res, with_act)
    in_specs = [
        pl.BlockSpec((tile_d, tile_s), lambda i, k: (i, k)),   # adj (bf16)
        pl.BlockSpec((tile_d, H), lambda i, k: (i, 0)),        # er  (dst)
        pl.BlockSpec((H, tile_s), lambda i, k: (0, k)),        # el^T (src)
        pl.BlockSpec((tile_s, HD), lambda i, k: (k, 0)),       # feat (src)
        pl.BlockSpec((1, HD), lambda i, k: (0, 0)),            # bias
    ]
    if with_res:
        in_specs.append(pl.BlockSpec((tile_d, HD), lambda i, k: (i, 0)))
    return pl.pallas_call(
        kernel,
        out_shape=jax.ShapeDtypeStruct((n_pad, HD), jnp.float32),
        grid_spec=pltpu.PrefetchScalarGridSpec(
            num_scalar_prefetch=0,
            grid=(n_pad // tile_d, n_pad // tile_s),
            in_specs=in_specs,
            out_specs=pl.BlockSpec((tile_d, HD), lambda i, k: (i, 0)),
            scratch_shapes=[
                pltpu.VMEM((tile_d, H), jnp.float32),    # running max
                pltpu.VMEM((tile_d, H), jnp.float32),    # running denom
                pltpu.VMEM((tile_d, HD), jnp.float32),   # running numerator
            ]),
        compiler_params=pltpu.CompilerParams(
            dimension_semantics=("parallel", "arbitrary"),
            vmem_limit_bytes=32 * 1024 * 1024),
    )


# ---------------------------------------------------------------------------
# Python wrappers
# ---------------------------------------------------------------------------
def gat_conv(x, adj, params, *, num_heads, out_feats, negative_slope,
             residual, activation, tile_d=128, tile_s=128):
    """One GATConv layer; returns (N, num_heads*out_feats) flatten(1) layout."""
    n, fin = x.shape
    H, D = num_heads, out_feats
    HD = H * D

    n_pad = _round_up(n, math.lcm(tile_d, tile_s))
    tile_r = tile_d

    x_p = jnp.zeros((n_pad, fin), jnp.float32).at[:n, :].set(
        x.astype(jnp.float32))
    adj_p = jnp.zeros((n_pad, n_pad), jnp.bfloat16).at[:n, :n].set(
        (adj > 0).astype(jnp.bfloat16))

    w16 = params["w"].astype(jnp.bfloat16)                   # (fin, HD)
    attn_l = params["attn_l"].astype(jnp.float32)            # (H, D)
    attn_r = params["attn_r"].astype(jnp.float32)            # (H, D)
    bias = params["bias"].astype(jnp.float32).reshape(1, HD)

    # Block-diagonal attention matrix: scores = feat @ am -> [el | er] (N, 2H)
    eye = jnp.eye(H, dtype=jnp.float32)
    al_mat = (attn_l[:, :, None] * eye[:, None, :]).reshape(HD, H)
    ar_mat = (attn_r[:, :, None] * eye[:, None, :]).reshape(HD, H)
    am = jnp.concatenate([al_mat, ar_mat], axis=1)           # (HD, 2H)

    res_w = params.get("res_w") if residual else None
    with_proj_res = bool(residual and res_w is not None)
    if residual and res_w is None:
        assert fin == HD, "identity residual requires matching dims"

    proj = _build_proj_call(n_pad, fin, HD, 2 * H, tile_r, with_proj_res)
    if with_proj_res:
        feat, scores, res = proj(x_p, w16, am, res_w.astype(jnp.bfloat16))
    else:
        feat, scores = proj(x_p, w16, am)
        res = x_p if residual else None       # identity residual path

    el_t = scores[:, :H].T                     # (H, n_pad) -- src-indexed rows
    er = scores[:, H:]                         # (n_pad, H) -- dst-indexed

    attn = _build_attn_call(n_pad, H, D, tile_d, tile_s,
                            float(negative_slope), res is not None,
                            bool(activation))
    args = (adj_p, er, el_t, feat, bias)
    if res is not None:
        args = args + (res,)
    out = attn(*args)
    return out[:n]


def gat_forward(x, adj, layer_params, *, heads, num_hidden, num_classes,
                num_layers, negative_slope, residual):
    h = x
    for l in range(num_layers):
        h = gat_conv(h, adj, layer_params[l],
                     num_heads=heads[l], out_feats=num_hidden,
                     negative_slope=negative_slope,
                     residual=(residual and l > 0),   # first layer: no residual
                     activation=True)
    out = gat_conv(h, adj, layer_params[-1],
                   num_heads=heads[-1], out_feats=num_classes,
                   negative_slope=negative_slope,
                   residual=residual, activation=False)
    n = x.shape[0]
    logits = out.reshape(n, heads[-1], num_classes).mean(axis=1)
    return logits


if __name__ == "__main__":
    N = 16
    in_dim = 8
    num_hidden = 8
    num_classes = 4
    heads = [2, 2]
    num_layers = 1
    negative_slope = 0.2
    residual = True

    key = jax.random.PRNGKey(0)
    keys = jax.random.split(key, 10)

    x = jax.random.normal(keys[0], (N, in_dim), jnp.float32)
    # deterministic sparse-ish graph with self-loops; adj[dst, src]
    adj = (jax.random.uniform(keys[1], (N, N)) < 0.25).astype(jnp.float32)
    adj = jnp.maximum(adj, jnp.eye(N, dtype=jnp.float32))

    def xavier(k, shape, gain=1.414):
        fan_in, fan_out = shape[0], shape[-1]
        std = gain * (2.0 / (fan_in + fan_out)) ** 0.5
        return std * jax.random.normal(k, shape, jnp.float32)

    layer_params = [
        # layer 0: in_dim -> num_hidden, heads[0], no residual, ELU activation
        {
            "w": xavier(keys[2], (in_dim, heads[0] * num_hidden)),
            "attn_l": xavier(keys[3], (heads[0], num_hidden)),
            "attn_r": xavier(keys[4], (heads[0], num_hidden)),
            "bias": jnp.zeros((heads[0], num_hidden), jnp.float32),
        },
        # output layer: hidden*heads[0] -> classes, heads[1], residual, no act.
        {
            "w": xavier(keys[5], (num_hidden * heads[0], heads[1] * num_classes)),
            "attn_l": xavier(keys[6], (heads[1], num_classes)),
            "attn_r": xavier(keys[7], (heads[1], num_classes)),
            "bias": jnp.zeros((heads[1], num_classes), jnp.float32),
            "res_w": xavier(keys[8], (num_hidden * heads[0], heads[1] * num_classes)),
        },
    ]

    logits = gat_forward(x, adj, layer_params, heads=heads,
                         num_hidden=num_hidden, num_classes=num_classes,
                         num_layers=num_layers, negative_slope=negative_slope,
                         residual=residual)
    jax.block_until_ready(logits)
    assert logits.shape == (N, num_classes)
    assert bool(jnp.all(jnp.isfinite(logits)))
    print("KERNEL_OK")
</pallas_src>

<mosaic_0001>
module attributes {stable_mosaic.version = 11 : i64} {
  func.func @kernel(%arg0: i32, %arg1: memref<128x8xf32, #tpu.memory_space<vmem>>, %arg2: memref<8x16xbf16, #tpu.memory_space<vmem>>, %arg3: memref<16x4xf32, #tpu.memory_space<vmem>>, %arg4: memref<128x16xbf16, #tpu.memory_space<vmem>>, %arg5: memref<128x4xf32, #tpu.memory_space<vmem>>) attributes {dimension_semantics = [#tpu.dimension_semantics<parallel>], iteration_bounds = array<i64: 1>, scalar_prefetch = 0 : i64, scratch_operands = 0 : i64, tpu.core_type = #tpu.core_type<tc>, window_params = [{transform_indices = @transform_0, window_bounds = array<i64: 128, 8>}, {pipeline_mode = #tpu.pipeline_mode<synchronous>, transform_indices = @transform_1, window_bounds = array<i64: 8, 16>}, {pipeline_mode = #tpu.pipeline_mode<synchronous>, transform_indices = @transform_2, window_bounds = array<i64: 16, 4>}, {transform_indices = @transform_3, window_bounds = array<i64: 128, 16>}, {transform_indices = @transform_4, window_bounds = array<i64: 128, 4>}]} {
    %c0 = arith.constant 0 : index
    %c0_0 = arith.constant 0 : index
    %0 = vector.load %arg1[%c0, %c0_0] : memref<128x8xf32, #tpu.memory_space<vmem>>, vector<128x8xf32>
    %1 = arith.truncf %0 : vector<128x8xf32> to vector<128x8xbf16>
    %c0_1 = arith.constant 0 : index
    %c0_2 = arith.constant 0 : index
    %2 = vector.load %arg2[%c0_1, %c0_2] : memref<8x16xbf16, #tpu.memory_space<vmem>>, vector<8x16xbf16>
    %cst = arith.constant dense<0.000000e+00> : vector<128x16xf32>
    %3 = tpu.matmul %1, %2, %cst {dimension_numbers = #tpu.dot_dimension_numbers<[1], [0], [0], [1], [0, 0, 1, 1], [], []>} : vector<128x8xbf16>, vector<8x16xbf16>, vector<128x16xf32> -> vector<128x16xf32>
    %4 = arith.truncf %3 : vector<128x16xf32> to vector<128x16xbf16>
    %c0_3 = arith.constant 0 : index
    %c0_4 = arith.constant 0 : index
    %5 = vector.load %arg4[%c0_3, %c0_4] : memref<128x16xbf16, #tpu.memory_space<vmem>>, vector<128x16xbf16>
    tpu.vector_store %arg4[%c0_3, %c0_4], %4 {strides = array<i32>} : memref<128x16xbf16, #tpu.memory_space<vmem>>, vector<128x16xbf16>,
    %c0_5 = arith.constant 0 : index
    %c0_6 = arith.constant 0 : index
    %6 = vector.load %arg3[%c0_5, %c0_6] : memref<16x4xf32, #tpu.memory_space<vmem>>, vector<16x4xf32>
    %cst_7 = arith.constant dense<0.000000e+00> : vector<128x4xf32>
    %7 = tpu.matmul %3, %6, %cst_7 {dimension_numbers = #tpu.dot_dimension_numbers<[1], [0], [0], [1], [0, 0, 1, 1], [], []>} : vector<128x16xf32>, vector<16x4xf32>, vector<128x4xf32> -> vector<128x4xf32>
    %c0_8 = arith.constant 0 : index
    %c0_9 = arith.constant 0 : index
    %8 = vector.load %arg5[%c0_8, %c0_9] : memref<128x4xf32, #tpu.memory_space<vmem>>, vector<128x4xf32>
    tpu.vector_store %arg5[%c0_8, %c0_9], %7 {strides = array<i32>} : memref<128x4xf32, #tpu.memory_space<vmem>>, vector<128x4xf32>,
    return
  }
  func.func @transform_0(%arg0: i32) -> (i32, i32) {
    %c0_i32 = arith.constant 0 : i32
    %c0_i32_0 = arith.constant 0 : i32
    return %arg0, %c0_i32 : i32, i32
  }
  func.func @transform_1(%arg0: i32) -> (i32, i32) {
    %c0_i32 = arith.constant 0 : i32
    %c0_i32_0 = arith.constant 0 : i32
    %c0_i32_1 = arith.constant 0 : i32
    return %c0_i32, %c0_i32_0 : i32, i32
  }
  func.func @transform_2(%arg0: i32) -> (i32, i32) {
    %c0_i32 = arith.constant 0 : i32
    %c0_i32_0 = arith.constant 0 : i32
    %c0_i32_1 = arith.constant 0 : i32
    return %c0_i32, %c0_i32_0 : i32, i32
  }
  func.func @transform_3(%arg0: i32) -> (i32, i32) {
    %c0_i32 = arith.constant 0 : i32
    %c0_i32_0 = arith.constant 0 : i32
    return %arg0, %c0_i32 : i32, i32
  }
  func.func @transform_4(%arg0: i32) -> (i32, i32) {
    %c0_i32 = arith.constant 0 : i32
    %c0_i32_0 = arith.constant 0 : i32
    return %arg0, %c0_i32 : i32, i32
  }
}

</mosaic_0001>

<llo_original>
// kernel: tpu_custom_call.1
$region0: #{tpu_custom_call.1}
  #allocation0 [shape = 'u32[]', space=smem, size = 0x4, offset = 0x4, fixed_abs, tag = 'smem constant byte address 0x4 - core index']
  #allocation1 [shape = 'u32[144,128]{1,0:T(1,128)}', space=vmem, size = 0x12000, scoped, tag = 'internal scratch']
  %s0 = inlined_call_operand.vmem [shape: f32[128,8], index: 0, kind: input, shape index: {}]
  %s1 = inlined_call_operand.vmem [shape: bf16[8,16], index: 1, kind: input, shape index: {}]
  %s2 = inlined_call_operand.vmem [shape: f32[16,4], index: 2, kind: input, shape index: {}]
  %s3 = inlined_call_operand.vmem [shape: bf16[128,16], index: 3, kind: output, shape index: {0}]
  %s4 = inlined_call_operand.vmem [shape: f32[128,4], index: 4, kind: output, shape index: {1}]
  %5 = xla_tuple %s3, %s4
  %s6 = sld [smem:[#allocation0]]
  $region30: #{tpu_custom_call.1} parent=0
    _
  %s8 = ssub.s32 1, %s6
  %s9 = scalar_select 0, %s8, %s6
  // Predicated region
  $region2: #{tpu_custom_call.1} parent=0 // pred_check
    _
  $region3: #{tpu_custom_call.1} parent=0 // pred_check_branch
    %11 = sbr.rel (0) target = $region5
  $region4: #{tpu_custom_call.1} parent=0 // pred_region
    _
  $region5: #{tpu_custom_call.1} parent=0 // pred_fallthru
    _
  // Predicated region
  $region6: #{tpu_custom_call.1} parent=0 // pred_check
    _
  $region7: #{tpu_custom_call.1} parent=0 // pred_check_branch
    %13 = sbr.rel (0) target = $region9
  $region8: #{tpu_custom_call.1} parent=0 // pred_region
    _
  $region9: #{tpu_custom_call.1} parent=0 // pred_fallthru
    _
  // Predicated region
  $region10: #{tpu_custom_call.1} parent=0 // pred_check
    _
  $region11: #{tpu_custom_call.1} parent=0 // pred_check_branch
    %15 = sbr.rel (0) target = $region13
  $region12: #{tpu_custom_call.1} parent=0 // pred_region
    _
  $region13: #{tpu_custom_call.1} parent=0 // pred_fallthru
    _
  %v17 = vld [vmem:[%s0] sm:$0xff]
  %v18 = vld [vmem:[%s0 + $0x8] sm:$0xff]
  %v19 = vld [vmem:[%s0 + $0x10] sm:$0xff]
  %v20 = vld [vmem:[%s0 + $0x18] sm:$0xff]
  %v21 = vld [vmem:[%s0 + $0x20] sm:$0xff]
  %v22 = vld [vmem:[%s0 + $0x28] sm:$0xff]
  %v23 = vld [vmem:[%s0 + $0x30] sm:$0xff]
  %v24 = vld [vmem:[%s0 + $0x38] sm:$0xff]
  %v25 = vld [vmem:[%s0 + $0x40] sm:$0xff]
  %v26 = vld [vmem:[%s0 + $0x48] sm:$0xff]
  %v27 = vld [vmem:[%s0 + $0x50] sm:$0xff]
  %v28 = vld [vmem:[%s0 + $0x58] sm:$0xff]
  %v29 = vld [vmem:[%s0 + $0x60] sm:$0xff]
  %v30 = vld [vmem:[%s0 + $0x68] sm:$0xff]
  %v31 = vld [vmem:[%s0 + $0x70] sm:$0xff]
  %v32 = vld [vmem:[%s0 + $0x78] sm:$0xff]
  %v33 = vpack.c.bf16 %v18, %v17
  %v34 = vpack.c.bf16 %v20, %v19
  %v35 = vpack.c.bf16 %v22, %v21
  %v36 = vpack.c.bf16 %v24, %v23
  %v37 = vpack.c.bf16 %v26, %v25
  %v38 = vpack.c.bf16 %v28, %v27
  %v39 = vpack.c.bf16 %v30, %v29
  %v40 = vpack.c.bf16 %v32, %v31
  %v41 = vld [vmem:[%s1] sm:$0xf]
  %vm42 = vcmask 64512
  %v44 = vsel %vm42, %v33, 0
  %v47 = vsel %vm42, %v34, 0
  %v50 = vsel %vm42, %v35, 0
  %v53 = vsel %vm42, %v36, 0
  %v56 = vsel %vm42, %v37, 0
  %v59 = vsel %vm42, %v38, 0
  %v62 = vsel %vm42, %v39, 0
  %v65 = vsel %vm42, %v40, 0
  %vm67 = vcmask 1043456
  %v69 = vsel %vm67, %v41, 0
  %71 = vmatprep.subr.bf16.mxu0 0
  %72 = vmatpush1.bf16.msra.mxu0 %v69
  %73 = vmatprep.subr.bf16.mxu0 0
  %74 = vmatpush1.bf16.msra.mxu0 0
  %75 = vmatprep.subr.bf16.mxu0 0
  %76 = vmatpush1.bf16.msra.mxu0 0
  %77 = vmatprep.subr.bf16.mxu0 0
  %78 = vmatpush1.bf16.msra.mxu0 0
  %79 = vmatprep.subr.bf16.mxu0 0
  %80 = vmatpush1.bf16.msra.mxu0 0
  %81 = vmatprep.subr.bf16.mxu0 0
  %82 = vmatpush1.bf16.msra.mxu0 0
  %83 = vmatprep.subr.bf16.mxu0 0
  %84 = vmatpush1.bf16.msra.mxu0 0
  %85 = vmatprep.subr.bf16.mxu0 0
  %86 = vmatpush1.bf16.msra.mxu0 0
  %87 = vmatprep.subr.bf16.mxu0 0
  %88 = vmatpush1.bf16.msra.mxu0 0
  %89 = vmatprep.subr.bf16.mxu0 0
  %90 = vmatpush1.bf16.msra.mxu0 0
  %91 = vmatprep.subr.bf16.mxu0 0
  %92 = vmatpush1.bf16.msra.mxu0 0
  %93 = vmatprep.subr.bf16.mxu0 0
  %94 = vmatpush1.bf16.msra.mxu0 0
  %95 = vmatprep.subr.bf16.mxu0 0
  %96 = vmatpush1.bf16.msra.mxu0 0
  %97 = vmatprep.subr.bf16.mxu0 0
  %98 = vmatpush1.bf16.msra.mxu0 0
  %99 = vmatprep.subr.bf16.mxu0 0
  %100 = vmatpush1.bf16.msra.mxu0 0
  %101 = vmatprep.subr.bf16.mxu0 0
  %102 = vmatpush1.bf16.msra.mxu0 0
  %103 = vmatprep.mubr.bf16.mxu0 0
  %104 = vmatmul.mubr.bf16.gmra.mrb[0].mxu0 %v44
  %v105 = vpop.f32.mrb[0].mxu0
  %v106 = vadd.f32 0.0, %v105
  %v107 = vpop.f32.mrb[0].mxu0
  %v108 = vpop.f32.mrb[0].mxu0
  %v109 = vadd.f32 0.0, %v108
  %v110 = vpop.f32.mrb[0].mxu0
  %111 = vmatprep.mubr.bf16.mxu0 0
  %112 = vmatmul.mubr.bf16.gmra.mrb[0].mxu0 %v47
  %v113 = vpop.f32.mrb[0].mxu0
  %v114 = vadd.f32 0.0, %v113
  %v115 = vpop.f32.mrb[0].mxu0
  %v116 = vpop.f32.mrb[0].mxu0
  %v117 = vadd.f32 0.0, %v116
  %v118 = vpop.f32.mrb[0].mxu0
  %119 = vmatprep.mubr.bf16.mxu0 0
  %120 = vmatmul.mubr.bf16.gmra.mrb[0].mxu0 %v50
  %v121 = vpop.f32.mrb[0].mxu0
  %v122 = vadd.f32 0.0, %v121
  %v123 = vpop.f32.mrb[0].mxu0
  %v124 = vpop.f32.mrb[0].mxu0
  %v125 = vadd.f32 0.0, %v124
  %v126 = vpop.f32.mrb[0].mxu0
  %127 = vmatprep.mubr.bf16.mxu0 0
  %128 = vmatmul.mubr.bf16.gmra.mrb[0].mxu0 %v53
  %v129 = vpop.f32.mrb[0].mxu0
  %v130 = vadd.f32 0.0, %v129
  %v131 = vpop.f32.mrb[0].mxu0
  %v132 = vpop.f32.mrb[0].mxu0
  %v133 = vadd.f32 0.0, %v132
  %v134 = vpop.f32.mrb[0].mxu0
  %135 = vmatprep.mubr.bf16.mxu0 0
  %136 = vmatmul.mubr.bf16.gmra.mrb[0].mxu0 %v56
  %v137 = vpop.f32.mrb[0].mxu0
  %v138 = vadd.f32 0.0, %v137
  %v139 = vpop.f32.mrb[0].mxu0
  %v140 = vpop.f32.mrb[0].mxu0
  %v141 = vadd.f32 0.0, %v140
  %v142 = vpop.f32.mrb[0].mxu0
  %143 = vmatprep.mubr.bf16.mxu0 0
  %144 = vmatmul.mubr.bf16.gmra.mrb[0].mxu0 %v59
  %v145 = vpop.f32.mrb[0].mxu0
  %v146 = vadd.f32 0.0, %v145
  %v147 = vpop.f32.mrb[0].mxu0
  %v148 = vpop.f32.mrb[0].mxu0
  %v149 = vadd.f32 0.0, %v148
  %v150 = vpop.f32.mrb[0].mxu0
  %151 = vmatprep.mubr.bf16.mxu0 0
  %152 = vmatmul.mubr.bf16.gmra.mrb[0].mxu0 %v62
  %v153 = vpop.f32.mrb[0].mxu0
  %v154 = vadd.f32 0.0, %v153
  %v155 = vpop.f32.mrb[0].mxu0
  %v156 = vpop.f32.mrb[0].mxu0
  %v157 = vadd.f32 0.0, %v156
  %v158 = vpop.f32.mrb[0].mxu0
  %159 = vmatprep.mubr.bf16.mxu0 0
  %160 = vmatmul.mubr.bf16.gmra.mrb[0].mxu0 %v65
  %v161 = vpop.f32.mrb[0].mxu0
  %v162 = vadd.f32 0.0, %v161
  %v163 = vpop.f32.mrb[0].mxu0
  %v164 = vpop.f32.mrb[0].mxu0
  %v165 = vadd.f32 0.0, %v164
  %v166 = vpop.f32.mrb[0].mxu0
  %167 = vdwg.mxu0
  %v168 = vpack.c.bf16 %v109, %v106
  %v169 = vpack.c.bf16 %v117, %v114
  %v170 = vpack.c.bf16 %v125, %v122
  %v171 = vpack.c.bf16 %v133, %v130
  %v172 = vpack.c.bf16 %v141, %v138
  %v173 = vpack.c.bf16 %v149, %v146
  %v174 = vpack.c.bf16 %v157, %v154
  %v175 = vpack.c.bf16 %v165, %v162
  %v184 = vunpack.c.l.b16 %v168
  %v185 = vunpack.c.h.b16 %v168
  %v186 = vunpack.c.l.b16 %v169
  %v187 = vunpack.c.h.b16 %v169
  %v188 = vunpack.c.l.b16 %v170
  %v189 = vunpack.c.h.b16 %v170
  %v190 = vunpack.c.l.b16 %v171
  %v191 = vunpack.c.h.b16 %v171
  %v192 = vunpack.c.l.b16 %v172
  %v193 = vunpack.c.h.b16 %v172
  %v194 = vunpack.c.l.b16 %v173
  %v195 = vunpack.c.h.b16 %v173
  %v196 = vunpack.c.l.b16 %v174
  %v197 = vunpack.c.h.b16 %v174
  %v198 = vunpack.c.l.b16 %v175
  %v199 = vunpack.c.h.b16 %v175
  %v200 = vpack.c.b16 %v184, %v184
  %v201 = vpack.c.b16 %v185, %v185
  %v202 = vpack.c.b16 %v186, %v186
  %v203 = vpack.c.b16 %v187, %v187
  %v204 = vpack.c.b16 %v188, %v188
  %v205 = vpack.c.b16 %v189, %v189
  %v206 = vpack.c.b16 %v190, %v190
  %v207 = vpack.c.b16 %v191, %v191
  %v208 = vpack.c.b16 %v192, %v192
  %v209 = vpack.c.b16 %v193, %v193
  %v210 = vpack.c.b16 %v194, %v194
  %v211 = vpack.c.b16 %v195, %v195
  %v212 = vpack.c.b16 %v196, %v196
  %v213 = vpack.c.b16 %v197, %v197
  %v214 = vpack.c.b16 %v198, %v198
  %v215 = vpack.c.b16 %v199, %v199
  %vm232 = vcmask 125952
  %233 = vst.msk [vmem:[%s3] sm:$0xf] %vm232, %v200
  %234 = vst.msk [vmem:[%s3 + $0x4] sm:$0xf] %vm232, %v201
  %235 = vst.msk [vmem:[%s3 + $0x8] sm:$0xf] %vm232, %v202
  %236 = vst.msk [vmem:[%s3 + $0xc] sm:$0xf] %vm232, %v203
  %237 = vst.msk [vmem:[%s3 + $0x10] sm:$0xf] %vm232, %v204
  %238 = vst.msk [vmem:[%s3 + $0x14] sm:$0xf] %vm232, %v205
  %239 = vst.msk [vmem:[%s3 + $0x18] sm:$0xf] %vm232, %v206
  %240 = vst.msk [vmem:[%s3 + $0x1c] sm:$0xf] %vm232, %v207
  %241 = vst.msk [vmem:[%s3 + $0x20] sm:$0xf] %vm232, %v208
  %242 = vst.msk [vmem:[%s3 + $0x24] sm:$0xf] %vm232, %v209
  %243 = vst.msk [vmem:[%s3 + $0x28] sm:$0xf] %vm232, %v210
  %244 = vst.msk [vmem:[%s3 + $0x2c] sm:$0xf] %vm232, %v211
  %245 = vst.msk [vmem:[%s3 + $0x30] sm:$0xf] %vm232, %v212
  %246 = vst.msk [vmem:[%s3 + $0x34] sm:$0xf] %vm232, %v213
  %247 = vst.msk [vmem:[%s3 + $0x38] sm:$0xf] %vm232, %v214
  %248 = vst.msk [vmem:[%s3 + $0x3c] sm:$0xf] %vm232, %v215
  %v249 = vld [vmem:[%s2] sm:$0xff]
  %v250 = vld [vmem:[%s2 + $0x8] sm:$0xff]
  %vm251 = vcmask 130048
  %v253 = vsel %vm251, %v106, 0
  %v256 = vsel %vm251, %v109, 0
  %v259 = vsel %vm251, %v114, 0
  %v262 = vsel %vm251, %v117, 0
  %v265 = vsel %vm251, %v122, 0
  %v268 = vsel %vm251, %v125, 0
  %v271 = vsel %vm251, %v130, 0
  %v274 = vsel %vm251, %v133, 0
  %v277 = vsel %vm251, %v138, 0
  %v280 = vsel %vm251, %v141, 0
  %v283 = vsel %vm251, %v146, 0
  %v286 = vsel %vm251, %v149, 0
  %v289 = vsel %vm251, %v154, 0
  %v292 = vsel %vm251, %v157, 0
  %v295 = vsel %vm251, %v162, 0
  %v298 = vsel %vm251, %v165, 0
  %300 = vmatprep.subr.mxu0 0.0
  %301 = vmatpush1.msra.mxu0 %v249
  %302 = vmatprep.subr.mxu0 0.0
  %303 = vmatpush1.msra.mxu0 %v250
  %304 = vmatprep.subr.mxu0 0.0
  %305 = vmatpush1.msra.mxu0 0.0
  %306 = vmatprep.subr.mxu0 0.0
  %307 = vmatpush1.msra.mxu0 0.0
  %308 = vmatprep.subr.mxu0 0.0
  %309 = vmatpush1.msra.mxu0 0.0
  %310 = vmatprep.subr.mxu0 0.0
  %311 = vmatpush1.msra.mxu0 0.0
  %312 = vmatprep.subr.mxu0 0.0
  %313 = vmatpush1.msra.mxu0 0.0
  %314 = vmatprep.subr.mxu0 0.0
  %315 = vmatpush1.msra.mxu0 0.0
  %316 = vmatprep.subr.mxu0 0.0
  %317 = vmatpush1.msra.mxu0 0.0
  %318 = vmatprep.subr.mxu0 0.0
  %319 = vmatpush1.msra.mxu0 0.0
  %320 = vmatprep.subr.mxu0 0.0
  %321 = vmatpush1.msra.mxu0 0.0
  %322 = vmatprep.subr.mxu0 0.0
  %323 = vmatpush1.msra.mxu0 0.0
  %324 = vmatprep.subr.mxu0 0.0
  %325 = vmatpush1.msra.mxu0 0.0
  %326 = vmatprep.subr.mxu0 0.0
  %327 = vmatpush1.msra.mxu0 0.0
  %328 = vmatprep.subr.mxu0 0.0
  %329 = vmatpush1.msra.mxu0 0.0
  %330 = vmatprep.subr.mxu0 0.0
  %331 = vmatpush1.msra.mxu0 0.0
  %332 = vmatprep.subr.mxu0 0.0
  %333 = vmatpush1.msra.mxu0 0.0
  %334 = vmatprep.subr.mxu0 0.0
  %335 = vmatpush1.msra.mxu0 0.0
  %336 = vmatprep.subr.mxu0 0.0
  %337 = vmatpush1.msra.mxu0 0.0
  %338 = vmatprep.subr.mxu0 0.0
  %339 = vmatpush1.msra.mxu0 0.0
  %340 = vmatprep.subr.mxu0 0.0
  %341 = vmatpush1.msra.mxu0 0.0
  %342 = vmatprep.subr.mxu0 0.0
  %343 = vmatpush1.msra.mxu0 0.0
  %344 = vmatprep.subr.mxu0 0.0
  %345 = vmatpush1.msra.mxu0 0.0
  %346 = vmatprep.subr.mxu0 0.0
  %347 = vmatpush1.msra.mxu0 0.0
  %348 = vmatprep.subr.mxu0 0.0
  %349 = vmatpush1.msra.mxu0 0.0
  %350 = vmatprep.subr.mxu0 0.0
  %351 = vmatpush1.msra.mxu0 0.0
  %352 = vmatprep.subr.mxu0 0.0
  %353 = vmatpush1.msra.mxu0 0.0
  %354 = vmatprep.subr.mxu0 0.0
  %355 = vmatpush1.msra.mxu0 0.0
  %356 = vmatprep.subr.mxu0 0.0
  %357 = vmatpush1.msra.mxu0 0.0
  %358 = vmatprep.subr.mxu0 0.0
  %359 = vmatpush1.msra.mxu0 0.0
  %360 = vmatprep.subr.mxu0 0.0
  %361 = vmatpush1.msra.mxu0 0.0
  %362 = vmatprep.subr.mxu0 0.0
  %363 = vmatpush1.msra.mxu0 0.0
  %364 = vmatprep.mubr.f32.mxu0 0.0
  %365 = vmatmul.mubr.f32.gmra.mrb[0].mxu0 %v253
  %v366 = vpop.f32.mrb[0].mxu0
  %v367 = vadd.f32 0.0, %v366
  %v368 = vpop.f32.mrb[0].mxu0
  %369 = vmatprep.mubr.f32.mxu0 0.0
  %370 = vmatmul.mubr.f32.gmra.mrb[0].mxu0 %v256
  %v371 = vpop.f32.mrb[0].mxu0
  %v372 = vadd.f32 0.0, %v371
  %v373 = vpop.f32.mrb[0].mxu0
  %374 = vmatprep.mubr.f32.mxu0 0.0
  %375 = vmatmul.mubr.f32.gmra.mrb[0].mxu0 %v259
  %v376 = vpop.f32.mrb[0].mxu0
  %v377 = vadd.f32 0.0, %v376
  %v378 = vpop.f32.mrb[0].mxu0
  %379 = vmatprep.mubr.f32.mxu0 0.0
  %380 = vmatmul.mubr.f32.gmra.mrb[0].mxu0 %v262
  %v381 = vpop.f32.mrb[0].mxu0
  %v382 = vadd.f32 0.0, %v381
  %v383 = vpop.f32.mrb[0].mxu0
  %384 = vmatprep.mubr.f32.mxu0 0.0
  %385 = vmatmul.mubr.f32.gmra.mrb[0].mxu0 %v265
  %v386 = vpop.f32.mrb[0].mxu0
  %v387 = vadd.f32 0.0, %v386
  %v388 = vpop.f32.mrb[0].mxu0
  %389 = vmatprep.mubr.f32.mxu0 0.0
  %390 = vmatmul.mubr.f32.gmra.mrb[0].mxu0 %v268
  %v391 = vpop.f32.mrb[0].mxu0
  %v392 = vadd.f32 0.0, %v391
  %v393 = vpop.f32.mrb[0].mxu0
  %394 = vmatprep.mubr.f32.mxu0 0.0
  %395 = vmatmul.mubr.f32.gmra.mrb[0].mxu0 %v271
  %v396 = vpop.f32.mrb[0].mxu0
  %v397 = vadd.f32 0.0, %v396
  %v398 = vpop.f32.mrb[0].mxu0
  %399 = vmatprep.mubr.f32.mxu0 0.0
  %400 = vmatmul.mubr.f32.gmra.mrb[0].mxu0 %v274
  %v401 = vpop.f32.mrb[0].mxu0
  %v402 = vadd.f32 0.0, %v401
  %v403 = vpop.f32.mrb[0].mxu0
  %404 = vmatprep.mubr.f32.mxu0 0.0
  %405 = vmatmul.mubr.f32.gmra.mrb[0].mxu0 %v277
  %v406 = vpop.f32.mrb[0].mxu0
  %v407 = vadd.f32 0.0, %v406
  %v408 = vpop.f32.mrb[0].mxu0
  %409 = vmatprep.mubr.f32.mxu0 0.0
  %410 = vmatmul.mubr.f32.gmra.mrb[0].mxu0 %v280
  %v411 = vpop.f32.mrb[0].mxu0
  %v412 = vadd.f32 0.0, %v411
  %v413 = vpop.f32.mrb[0].mxu0
  %414 = vmatprep.mubr.f32.mxu0 0.0
  %415 = vmatmul.mubr.f32.gmra.mrb[0].mxu0 %v283
  %v416 = vpop.f32.mrb[0].mxu0
  %v417 = vadd.f32 0.0, %v416
  %v418 = vpop.f32.mrb[0].mxu0
  %419 = vmatprep.mubr.f32.mxu0 0.0
  %420 = vmatmul.mubr.f32.gmra.mrb[0].mxu0 %v286
  %v421 = vpop.f32.mrb[0].mxu0
  %v422 = vadd.f32 0.0, %v421
  %v423 = vpop.f32.mrb[0].mxu0
  %424 = vmatprep.mubr.f32.mxu0 0.0
  %425 = vmatmul.mubr.f32.gmra.mrb[0].mxu0 %v289
  %v426 = vpop.f32.mrb[0].mxu0
  %v427 = vadd.f32 0.0, %v426
  %v428 = vpop.f32.mrb[0].mxu0
  %429 = vmatprep.mubr.f32.mxu0 0.0
  %430 = vmatmul.mubr.f32.gmra.mrb[0].mxu0 %v292
  %v431 = vpop.f32.mrb[0].mxu0
  %v432 = vadd.f32 0.0, %v431
  %v433 = vpop.f32.mrb[0].mxu0
  %434 = vmatprep.mubr.f32.mxu0 0.0
  %435 = vmatmul.mubr.f32.gmra.mrb[0].mxu0 %v295
  %v436 = vpop.f32.mrb[0].mxu0
  %v437 = vadd.f32 0.0, %v436
  %v438 = vpop.f32.mrb[0].mxu0
  %439 = vmatprep.mubr.f32.mxu0 0.0
  %440 = vmatmul.mubr.f32.gmra.mrb[0].mxu0 %v298
  %v441 = vpop.f32.mrb[0].mxu0
  %v442 = vadd.f32 0.0, %v441
  %v443 = vpop.f32.mrb[0].mxu0
  %444 = vdwg.mxu0
  %vm445 = vcmask 31744
  %446 = vst.msk [vmem:[%s4] sm:$0xff] %vm445, %v367
  %447 = vst.msk [vmem:[%s4 + $0x8] sm:$0xff] %vm445, %v372
  %448 = vst.msk [vmem:[%s4 + $0x10] sm:$0xff] %vm445, %v377
  %449 = vst.msk [vmem:[%s4 + $0x18] sm:$0xff] %vm445, %v382
  %450 = vst.msk [vmem:[%s4 + $0x20] sm:$0xff] %vm445, %v387
  %451 = vst.msk [vmem:[%s4 + $0x28] sm:$0xff] %vm445, %v392
  %452 = vst.msk [vmem:[%s4 + $0x30] sm:$0xff] %vm445, %v397
  %453 = vst.msk [vmem:[%s4 + $0x38] sm:$0xff] %vm445, %v402
  %454 = vst.msk [vmem:[%s4 + $0x40] sm:$0xff] %vm445, %v407
  %455 = vst.msk [vmem:[%s4 + $0x48] sm:$0xff] %vm445, %v412
  %456 = vst.msk [vmem:[%s4 + $0x50] sm:$0xff] %vm445, %v417
  %457 = vst.msk [vmem:[%s4 + $0x58] sm:$0xff] %vm445, %v422
  %458 = vst.msk [vmem:[%s4 + $0x60] sm:$0xff] %vm445, %v427
  %459 = vst.msk [vmem:[%s4 + $0x68] sm:$0xff] %vm445, %v432
  %460 = vst.msk [vmem:[%s4 + $0x70] sm:$0xff] %vm445, %v437
  %461 = vst.msk [vmem:[%s4 + $0x78] sm:$0xff] %vm445, %v442
  // Predicated region
  $region14: #{tpu_custom_call.1} parent=0 // pred_check
    _
  $region15: #{tpu_custom_call.1} parent=0 // pred_check_branch
    %463 = sbr.rel (0) target = $region17
  $region16: #{tpu_custom_call.1} parent=0 // pred_region
    _
  $region17: #{tpu_custom_call.1} parent=0 // pred_fallthru
    _
  // Predicated region
  $region18: #{tpu_custom_call.1} parent=0 // pred_check
    _
  $region19: #{tpu_custom_call.1} parent=0 // pred_check_branch
    %465 = sbr.rel (0) target = $region21
  $region20: #{tpu_custom_call.1} parent=0 // pred_region
    _
  $region21: #{tpu_custom_call.1} parent=0 // pred_fallthru
    _
  // Predicated region
  $region22: #{tpu_custom_call.1} parent=0 // pred_check
    _
  $region23: #{tpu_custom_call.1} parent=0 // pred_check_branch
    %467 = sbr.rel (0) target = $region25
  $region24: #{tpu_custom_call.1} parent=0 // pred_region
    _
  $region25: #{tpu_custom_call.1} parent=0 // pred_fallthru
    _
  // Predicated region
  $region26: #{tpu_custom_call.1} parent=0 // pred_check
    _
  $region27: #{tpu_custom_call.1} parent=0 // pred_check_branch
    %469 = sbr.rel (0) target = $region29
  $region28: #{tpu_custom_call.1} parent=0 // pred_region
    _
  $region29: #{tpu_custom_call.1} parent=0 // pred_fallthru
    _

</llo_original>
